<compile_context>
chip_gen: v5e
topology: v5e:2x2
jax: 0.10.0
libtpu: 0.0.40
codegen_flags: <defaults>
</compile_context>

<pallas_src>
import functools
import math
from typing import NamedTuple

import jax
import jax.numpy as jnp
from jax.experimental import pallas as pl
from jax.experimental.pallas import tpu as pltpu


_LANE = 128
_SUBLANE = 8
_TM_BUCKETS = (8, 16, 32, 64, 128, 256, 512)

# Conservative VMEM budgets (bytes) so the resident-weight path fits v7x's
# 32 MiB scoped default (64 MiB physical) even with double buffering.
_RESIDENT_WEIGHT_BYTES_MAX = 8 * 1024 * 1024   # raw bytes of padded W0^T + W1^T
_RESIDENT_TILE_BYTES_MAX = 8 * 1024 * 1024     # double-buffered x + out tiles
_VMEM_LIMIT_BYTES = 32 * 1024 * 1024


def _round_up(v, m):
    return ((v + m - 1) // m) * m


def _cdiv(a, b):
    return (a + b - 1) // b


def _bucket_at_least(v):
    for b in _TM_BUCKETS:
        if b >= v:
            return b
    return _TM_BUCKETS[-1]


def _choose_tile(dim, preferred):
    """Lane-aligned tile size and the padded extent it evenly divides."""
    padded = _round_up(dim, _LANE)
    tile = min(preferred, padded)
    padded = _round_up(padded, tile)
    return tile, padded


class BlendLinearParams(NamedTuple):
    w0T: jax.Array   # (k_store, n_pad), weight dtype (f32 default, bf16 optional)
    w1T: jax.Array   # (k_store, n_pad)
    b0: jax.Array    # (1, n_pad), float32
    b1: jax.Array    # (1, n_pad), float32
    dim_in: int
    dim_out: int
    resident: bool   # True -> VMEM-resident weight path (k_store == dim_in)
    tk: int          # tiled-path K tile (unused on resident path)
    tn: int          # tiled-path N tile (unused on resident path)


def prepare_blend_linear_params(w0, b0, w1, b1, *, weight_dtype=None,
                                preferred_tile=512):
    """One-time prep: transpose + pad weights out of the per-call hot path.

    weight_dtype: optionally store weights as bf16 (recommended on v6e/v7x when
    tolerances allow).  The kernel always blends in f32 and accumulates in f32,
    so t is never rounded to bf16.
    """
    dim_out, dim_in = w0.shape
    wdt = jnp.dtype(weight_dtype) if weight_dtype is not None else jnp.dtype(w0.dtype)

    n_pad_res = _round_up(dim_out, _LANE)
    resident_bytes = 2 * dim_in * n_pad_res * wdt.itemsize
    resident = resident_bytes <= _RESIDENT_WEIGHT_BYTES_MAX

    if resident:
        k_store, n_store = dim_in, n_pad_res            # K not padded
        tk, tn = dim_in, n_pad_res
    else:
        tk, k_store = _choose_tile(dim_in, preferred_tile)
        tn, n_store = _choose_tile(dim_out, preferred_tile)

    def pad_wT(w):
        out = jnp.zeros((k_store, n_store), dtype=wdt)
        return out.at[:dim_in, :dim_out].set(w.T.astype(wdt))

    def pad_b(b):
        out = jnp.zeros((1, n_store), dtype=jnp.float32)
        return out.at[0, :dim_out].set(b.astype(jnp.float32))

    return BlendLinearParams(
        w0T=pad_wT(w0), w1T=pad_wT(w1), b0=pad_b(b0), b1=pad_b(b1),
        dim_in=dim_in, dim_out=dim_out, resident=resident, tk=tk, tn=tn)


# ---------------------------------------------------------------------------
# Path A: resident weights, 1-D grid over M (the common DiffEqLayer case).
# ---------------------------------------------------------------------------

def _blend_linear_resident_kernel(t_ref, x_ref, w0_ref, w1_ref, b0_ref, b1_ref,
                                  o_ref):
    # Weights / biases have constant index_maps -> DMA'd into VMEM once and
    # kept resident across the M grid; only x / out tiles stream.
    t = t_ref[0, 0]                                   # f32 scalar in SMEM
    w0 = w0_ref[...].astype(jnp.float32)
    w1 = w1_ref[...].astype(jnp.float32)
    # Blend in f32 (exact even for bf16-stored weights); re-doing this per M
    # tile is cheap VPU filler because no weight DMA accompanies it.
    w_blend = (w0 + (w1 - w0) * t).astype(x_ref.dtype)
    bias = b0_ref[...] + (b1_ref[...] - b0_ref[...]) * t
    acc = jnp.dot(x_ref[...], w_blend, preferred_element_type=jnp.float32)
    o_ref[...] = (acc + bias).astype(o_ref.dtype)


@functools.partial(jax.jit, static_argnames=("dim_out", "tm"))
def _blend_linear_resident_impl(t, x_flat, w0T, w1T, b0, b1, *, dim_out, tm):
    m, dim_in = x_flat.shape
    k, n_pad = w0T.shape            # k == dim_in (unpadded)

    # Only pad rows when M is smaller than one sublane group; other M
    # remainders are handled as partial last tiles (no per-call copy of x).
    m_run, x_run = m, x_flat
    if m < _SUBLANE:
        x_run = jnp.pad(x_flat, ((0, _SUBLANE - m), (0, 0)))
        m_run = _SUBLANE

    grid_m = _cdiv(m_run, tm)
    t_arr = jnp.asarray(t, dtype=jnp.float32).reshape(1, 1)

    x_bytes = x_flat.dtype.itemsize
    w_bytes = w0T.dtype.itemsize
    cost = pl.CostEstimate(
        flops=2 * m_run * k * n_pad + 3 * k * n_pad * grid_m,
        transcendentals=0,
        bytes_accessed=(m_run * k * x_bytes            # x read once
                        + 2 * k * n_pad * w_bytes      # resident weights: once
                        + 2 * n_pad * 4                # biases
                        + m_run * n_pad * x_bytes),    # output write
    )

    out = pl.pallas_call(
        _blend_linear_resident_kernel,
        out_shape=jax.ShapeDtypeStruct((m_run, n_pad), x_flat.dtype),
        grid_spec=pltpu.PrefetchScalarGridSpec(
            num_scalar_prefetch=0,
            grid=(grid_m,),
            in_specs=[
                pl.BlockSpec(memory_space=pltpu.SMEM),        # t (1,1)
                pl.BlockSpec((tm, k), lambda i: (i, 0)),      # x tile, full K
                pl.BlockSpec((k, n_pad), lambda i: (0, 0)),   # W0^T, resident
                pl.BlockSpec((k, n_pad), lambda i: (0, 0)),   # W1^T, resident
                pl.BlockSpec((1, n_pad), lambda i: (0, 0)),   # b0, resident
                pl.BlockSpec((1, n_pad), lambda i: (0, 0)),   # b1, resident
            ],
            out_specs=pl.BlockSpec((tm, n_pad), lambda i: (i, 0)),
        ),
        compiler_params=pltpu.CompilerParams(
            dimension_semantics=("parallel",),
            vmem_limit_bytes=_VMEM_LIMIT_BYTES),
        cost_estimate=cost,
    )(t_arr, x_run, w0T, w1T, b0, b1)

    if m_run != m or n_pad != dim_out:
        out = out[:m, :dim_out]
    return out


# ---------------------------------------------------------------------------
# Path B: tiled (M, N, K) fallback for weights too large to keep VMEM-resident.
# ---------------------------------------------------------------------------

def _blend_linear_tiled_kernel(t_ref, x_ref, w0_ref, w1_ref, b0_ref, b1_ref,
                               o_ref, acc_ref):
    k = pl.program_id(2)

    @pl.when(k == 0)
    def _init():
        acc_ref[...] = jnp.zeros_like(acc_ref)

    t = t_ref[0, 0]
    w0 = w0_ref[...].astype(jnp.float32)
    w1 = w1_ref[...].astype(jnp.float32)
    # Blended weight tile in f32, fed to the MXU in the activation dtype.
    w_blend = (w0 + (w1 - w0) * t).astype(x_ref.dtype)
    acc_ref[...] += jnp.dot(x_ref[...], w_blend,
                            preferred_element_type=jnp.float32)

    @pl.when(k == pl.num_programs(2) - 1)
    def _finalize():
        bias = b0_ref[...] + (b1_ref[...] - b0_ref[...]) * t
        o_ref[...] = (acc_ref[...] + bias).astype(o_ref.dtype)


@functools.partial(jax.jit, static_argnames=("dim_out", "tm", "tk", "tn"))
def _blend_linear_tiled_impl(t, x_flat, w0T, w1T, b0, b1, *, dim_out, tm, tk, tn):
    m, dim_in = x_flat.shape
    k_pad, n_pad = w0T.shape
    m_pad = _round_up(max(m, 1), tm)

    x_pad = x_flat
    if m_pad != m or k_pad != dim_in:
        # Zero-fill required: padded K columns enter the accumulation.
        x_pad = jnp.zeros((m_pad, k_pad), x_flat.dtype).at[:m, :dim_in].set(x_flat)

    t_arr = jnp.asarray(t, dtype=jnp.float32).reshape(1, 1)
    grid = (m_pad // tm, n_pad // tn, k_pad // tk)

    x_bytes = x_flat.dtype.itemsize
    w_bytes = w0T.dtype.itemsize
    cost = pl.CostEstimate(
        flops=2 * m_pad * k_pad * n_pad + 3 * k_pad * n_pad * grid[0],
        transcendentals=0,
        bytes_accessed=(m_pad * k_pad * x_bytes * grid[1]
                        + 2 * k_pad * n_pad * w_bytes * grid[0]  # re-reads per M tile
                        + 2 * n_pad * 4
                        + m_pad * n_pad * x_bytes),
    )

    out_pad = pl.pallas_call(
        _blend_linear_tiled_kernel,
        out_shape=jax.ShapeDtypeStruct((m_pad, n_pad), x_flat.dtype),
        grid_spec=pltpu.PrefetchScalarGridSpec(
            num_scalar_prefetch=0,
            grid=grid,
            in_specs=[
                pl.BlockSpec(memory_space=pltpu.SMEM),              # t (1,1)
                pl.BlockSpec((tm, tk), lambda i, j, kk: (i, kk)),   # x tile
                pl.BlockSpec((tk, tn), lambda i, j, kk: (kk, j)),   # W0^T tile
                pl.BlockSpec((tk, tn), lambda i, j, kk: (kk, j)),   # W1^T tile
                pl.BlockSpec((1, tn), lambda i, j, kk: (0, j)),     # b0 tile
                pl.BlockSpec((1, tn), lambda i, j, kk: (0, j)),     # b1 tile
            ],
            out_specs=pl.BlockSpec((tm, tn), lambda i, j, kk: (i, j)),
            scratch_shapes=[pltpu.VMEM((tm, tn), jnp.float32)],
        ),
        compiler_params=pltpu.CompilerParams(
            dimension_semantics=("parallel", "parallel", "arbitrary"),
            vmem_limit_bytes=_VMEM_LIMIT_BYTES),
        cost_estimate=cost,
    )(t_arr, x_pad, w0T, w1T, b0, b1)

    return out_pad[:m, :dim_out]


# ---------------------------------------------------------------------------
# Public wrapper.
# ---------------------------------------------------------------------------

def _pick_tm_resident(m, k, n_pad, x_bytes):
    # Largest bucket whose double-buffered x + out tiles fit the tile budget.
    cap = _TM_BUCKETS[0]
    for b in _TM_BUCKETS:
        if 2 * b * (k + n_pad) * x_bytes <= _RESIDENT_TILE_BYTES_MAX:
            cap = b
    # Prefer >= 2 M blocks so the "parallel" axis can shard across v7x's two
    # TensorCores, while keeping tiles large (weights are resident, so smaller
    # tm only costs ~0.35 us/step of grid overhead).
    target = _cdiv(m, 2) if m >= 2 * _SUBLANE else max(m, 1)
    return min(_bucket_at_least(target), cap)


def _pick_tm_tiled(m):
    # 256 matches the 256-wide MXU on v6e/v7x; bucketed to bound recompiles.
    return min(_bucket_at_least(max(m, 1)), 256)


def blend_linear(t, x, params: BlendLinearParams):
    """y = layer0(x) + (layer1(x) - layer0(x)) * t, for x of shape (..., dim_in)."""
    assert x.shape[-1] == params.dim_in
    lead = x.shape[:-1]
    m = 1
    for d in lead:
        m *= d
    x_flat = x.reshape(m, params.dim_in)

    if params.resident:
        k, n_pad = params.w0T.shape
        tm = _pick_tm_resident(m, k, n_pad, x_flat.dtype.itemsize)
        out = _blend_linear_resident_impl(
            t, x_flat, params.w0T, params.w1T, params.b0, params.b1,
            dim_out=params.dim_out, tm=tm)
    else:
        tm = _pick_tm_tiled(m)
        out = _blend_linear_tiled_impl(
            t, x_flat, params.w0T, params.w1T, params.b0, params.b1,
            dim_out=params.dim_out, tm=tm, tk=params.tk, tn=params.tn)
    return out.reshape(*lead, params.dim_out)


if __name__ == "__main__":
    # Small shapes consistent with the module: batch=2, seq=8, hidden=32 -> 64.
    batch, seq, dim_in, dim_out = 2, 8, 32, 64

    key = jax.random.PRNGKey(0)
    kx, kw0, kb0, kw1, kb1 = jax.random.split(key, 5)

    bound = 1.0 / math.sqrt(dim_in)
    w0 = jax.random.uniform(kw0, (dim_out, dim_in), minval=-bound, maxval=bound,
                            dtype=jnp.float32)
    b0 = jax.random.uniform(kb0, (dim_out,), minval=-bound, maxval=bound,
                            dtype=jnp.float32)
    w1 = jax.random.uniform(kw1, (dim_out, dim_in), minval=-bound, maxval=bound,
                            dtype=jnp.float32)
    b1 = jax.random.uniform(kb1, (dim_out,), minval=-bound, maxval=bound,
                            dtype=jnp.float32)
    x = jax.random.normal(kx, (batch, seq, dim_in), dtype=jnp.float32)
    t = 0.37

    # Weight transpose / padding happens once here (init time), not per call.
    # (On v6e/v7x, pass weight_dtype=jnp.bfloat16 when tolerances allow.)
    params = prepare_blend_linear_params(w0, b0, w1, b1)

    out = blend_linear(t, x, params)
    out = jax.block_until_ready(out)

    # Pure-JAX reference of the exact PyTorch semantics.
    y0 = x @ w0.T + b0
    y1 = x @ w1.T + b1
    ref = y0 + (y1 - y0) * t

    assert out.shape == ref.shape
    assert jnp.allclose(out, ref, atol=1e-4, rtol=1e-4), "mismatch vs reference"

    print("KERNEL_OK")
</pallas_src>

<mosaic_0001>
module attributes {stable_mosaic.version = 11 : i64} {
  func.func @_blend_linear_resident_kernel(%arg0: i32, %arg1: memref<1x1xf32, #tpu.memory_space<smem>>, %arg2: memref<8x32xf32, #tpu.memory_space<vmem>>, %arg3: memref<32x128xf32, #tpu.memory_space<vmem>>, %arg4: memref<32x128xf32, #tpu.memory_space<vmem>>, %arg5: memref<1x128xf32, #tpu.memory_space<vmem>>, %arg6: memref<1x128xf32, #tpu.memory_space<vmem>>, %arg7: memref<8x128xf32, #tpu.memory_space<vmem>>) attributes {dimension_semantics = [#tpu.dimension_semantics<parallel>], iteration_bounds = array<i64: 2>, scalar_prefetch = 0 : i64, scratch_operands = 0 : i64, tpu.core_type = #tpu.core_type<tc>, window_params = [{transform_indices = @transform_0, window_bounds = array<i64: 1, 1>}, {transform_indices = @transform_1, window_bounds = array<i64: 8, 32>}, {pipeline_mode = #tpu.pipeline_mode<synchronous>, transform_indices = @transform_2, window_bounds = array<i64: 32, 128>}, {pipeline_mode = #tpu.pipeline_mode<synchronous>, transform_indices = @transform_3, window_bounds = array<i64: 32, 128>}, {pipeline_mode = #tpu.pipeline_mode<synchronous>, transform_indices = @transform_4, window_bounds = array<i64: 1, 128>}, {pipeline_mode = #tpu.pipeline_mode<synchronous>, transform_indices = @transform_5, window_bounds = array<i64: 1, 128>}, {transform_indices = @transform_6, window_bounds = array<i64: 8, 128>}]} {
    %c0 = arith.constant 0 : index
    %c0_0 = arith.constant 0 : index
    %0 = memref.load %arg1[%c0, %c0_0] : memref<1x1xf32, #tpu.memory_space<smem>>
    %c0_1 = arith.constant 0 : index
    %c0_2 = arith.constant 0 : index
    %1 = vector.load %arg3[%c0_1, %c0_2] : memref<32x128xf32, #tpu.memory_space<vmem>>, vector<32x128xf32>
    %c0_3 = arith.constant 0 : index
    %c0_4 = arith.constant 0 : index
    %2 = vector.load %arg4[%c0_3, %c0_4] : memref<32x128xf32, #tpu.memory_space<vmem>>, vector<32x128xf32>
    %3 = arith.subf %2, %1 : vector<32x128xf32>
    %4 = vector.broadcast %0 : f32 to vector<32x128xf32>
    %5 = arith.mulf %3, %4 : vector<32x128xf32>
    %6 = arith.addf %1, %5 : vector<32x128xf32>
    %c0_5 = arith.constant 0 : index
    %c0_6 = arith.constant 0 : index
    %7 = vector.load %arg5[%c0_5, %c0_6] : memref<1x128xf32, #tpu.memory_space<vmem>>, vector<1x128xf32>
    %c0_7 = arith.constant 0 : index
    %c0_8 = arith.constant 0 : index
    %8 = vector.load %arg6[%c0_7, %c0_8] : memref<1x128xf32, #tpu.memory_space<vmem>>, vector<1x128xf32>
    %c0_9 = arith.constant 0 : index
    %c0_10 = arith.constant 0 : index
    %9 = vector.load %arg5[%c0_9, %c0_10] : memref<1x128xf32, #tpu.memory_space<vmem>>, vector<1x128xf32>
    %10 = arith.subf %8, %9 : vector<1x128xf32>
    %11 = vector.broadcast %0 : f32 to vector<1x128xf32>
    %12 = arith.mulf %10, %11 : vector<1x128xf32>
    %13 = arith.addf %7, %12 : vector<1x128xf32>
    %c0_11 = arith.constant 0 : index
    %c0_12 = arith.constant 0 : index
    %14 = vector.load %arg2[%c0_11, %c0_12] : memref<8x32xf32, #tpu.memory_space<vmem>>, vector<8x32xf32>
    %cst = arith.constant dense<0.000000e+00> : vector<8x128xf32>
    %15 = tpu.matmul %14, %6, %cst {dimension_numbers = #tpu.dot_dimension_numbers<[1], [0], [0], [1], [0, 0, 1, 1], [], []>} : vector<8x32xf32>, vector<32x128xf32>, vector<8x128xf32> -> vector<8x128xf32>
    %16 = vector.broadcast %13 : vector<1x128xf32> to vector<8x128xf32>
    %17 = arith.addf %15, %16 : vector<8x128xf32>
    %c0_13 = arith.constant 0 : index
    %c0_14 = arith.constant 0 : index
    %18 = vector.load %arg7[%c0_13, %c0_14] : memref<8x128xf32, #tpu.memory_space<vmem>>, vector<8x128xf32>
    tpu.vector_store %arg7[%c0_13, %c0_14], %17 {strides = array<i32>} : memref<8x128xf32, #tpu.memory_space<vmem>>, vector<8x128xf32>,
    return
  }
  func.func @transform_0(%arg0: i32) -> (i32, i32) {
    %c0_i32 = arith.constant 0 : i32
    %c0_i32_0 = arith.constant 0 : i32
    %c0_i32_1 = arith.constant 0 : i32
    return %c0_i32, %c0_i32_0 : i32, i32
  }
  func.func @transform_1(%arg0: i32) -> (i32, i32) {
    %c0_i32 = arith.constant 0 : i32
    %c0_i32_0 = arith.constant 0 : i32
    return %arg0, %c0_i32 : i32, i32
  }
  func.func @transform_2(%arg0: i32) -> (i32, i32) {
    %c0_i32 = arith.constant 0 : i32
    %c0_i32_0 = arith.constant 0 : i32
    %c0_i32_1 = arith.constant 0 : i32
    return %c0_i32, %c0_i32_0 : i32, i32
  }
  func.func @transform_3(%arg0: i32) -> (i32, i32) {
    %c0_i32 = arith.constant 0 : i32
    %c0_i32_0 = arith.constant 0 : i32
    %c0_i32_1 = arith.constant 0 : i32
    return %c0_i32, %c0_i32_0 : i32, i32
  }
  func.func @transform_4(%arg0: i32) -> (i32, i32) {
    %c0_i32 = arith.constant 0 : i32
    %c0_i32_0 = arith.constant 0 : i32
    %c0_i32_1 = arith.constant 0 : i32
    return %c0_i32, %c0_i32_0 : i32, i32
  }
  func.func @transform_5(%arg0: i32) -> (i32, i32) {
    %c0_i32 = arith.constant 0 : i32
    %c0_i32_0 = arith.constant 0 : i32
    %c0_i32_1 = arith.constant 0 : i32
    return %c0_i32, %c0_i32_0 : i32, i32
  }
  func.func @transform_6(%arg0: i32) -> (i32, i32) {
    %c0_i32 = arith.constant 0 : i32
    %c0_i32_0 = arith.constant 0 : i32
    return %arg0, %c0_i32 : i32, i32
  }
}

</mosaic_0001>

<llo_original>
// kernel: _blend_linear_resident_impl.1
$region0: #{_blend_linear_resident_impl.1}
  #allocation0 [shape = 'u32[]', space=smem, size = 0x4, offset = 0x4, fixed_abs, tag = 'smem constant byte address 0x4 - core index']
  #allocation1 [shape = 'u32[72,128]{1,0:T(1,128)}', space=vmem, size = 0x9000, scoped, tag = 'internal scratch']
  #allocation2 [shape = 'f32[1,1]{1,0:T(1,128)S(6)}', space=smem, size = 0x200, scoped, tag = 'scoped memory for _blend_linear_resident_impl.1']
  %s0 = inlined_call_operand.<no memory space> [shape: f32[1,1], index: 0, kind: input, shape index: {}]
  %s1 = inlined_call_operand.hbm [shape: f32[16,32], index: 1, kind: input, shape index: {}]
  %s2 = inlined_call_operand.hbm [shape: f32[32,128], index: 2, kind: input, shape index: {}]
  %s3 = inlined_call_operand.hbm [shape: f32[32,128], index: 3, kind: input, shape index: {}]
  %s4 = inlined_call_operand.vmem [shape: f32[1,128], index: 4, kind: input, shape index: {}]
  %s5 = inlined_call_operand.vmem [shape: f32[1,128], index: 5, kind: input, shape index: {}]
  %s6 = inlined_call_operand.hbm [shape: f32[16,128], index: 6, kind: output, shape index: {}]
  %s7 = sld [smem:[#allocation0]]
  $region69: #{_blend_linear_resident_impl.1} parent=0
    _
  %s9 = ssub.s32 1, %s7
  %s10 = scalar_select 0, %s9, %s7
  %11 = sst [smem:[#allocation2]] %s0
  $region1: #{_blend_linear_resident_impl.1} parent=0
    #allocation3 [shape = 'u8[8192]{0}', space=vmem, size = 0x2000, scoped, tag = 'input window, operand 1']
    #allocation4 [shape = 's32[2]{0}', space=sflag, size = 0x8, scoped, tag = 'scoped memory for _blend_linear_resident_impl.1']
    #allocation5 [shape = 's32[2]{0}', space=sflag, size = 0x8, scoped, tag = 'scoped memory for _blend_linear_resident_impl.1']
    #allocation6 [shape = 'u8[16384]{0}', space=vmem, size = 0x4000, scoped, tag = 'input window, operand 2, single buffered']
    #allocation7 [shape = 's32[1]{0}', space=sflag, size = 0x4, scoped, tag = 'scoped memory for _blend_linear_resident_impl.1']
    #allocation8 [shape = 'u8[16384]{0}', space=vmem, size = 0x4000, scoped, tag = 'input window, operand 3, single buffered']
    #allocation9 [shape = 'u8[8192]{0}', space=vmem, size = 0x2000, scoped, tag = 'output window, operand 0']
    %12 = vsyncpa [#allocation4], 0
    %s13 = scalar_lea.sflag [#allocation4], 1
    %14 = vsyncpa %s13, 0
    %15 = vsyncpa [#allocation7], 0
    %16 = vsyncpa [#allocation5], 0
    %s17 = scalar_lea.sflag [#allocation5], 1
    %18 = vsyncpa %s17, 0
    loop: start=0, step=1, limit=4
    $region2: #{_blend_linear_resident_impl.1} parent=1 // loop_pre_header
      _
    $region3: #{_blend_linear_resident_impl.1} parent=1 // loop_header
      %s20 = sphi 0, %s24
      %p21 = scmp.ge.s32.totalorder %s20, 4
      %s28 = sphi 0, %s28
      %s30 = sphi 0, %s28
      %s31 = sphi 0, %s30
      %s45 = sphi 0, %s31
      %s51 = sphi 0, %s53
      %s54 = sphi 0, %s51
      %s55 = sphi 0, %s54
      %s71 = sphi 0, %s55
      %s75 = sphi 0, %s75
      %s77 = sphi 0, %s75
      %s78 = sphi 0, %s77
      %s92 = sphi 0, %s78
      %s96 = sphi 0, %s96
      %s98 = sphi 0, %s96
      %s99 = sphi 0, %s98
      %s113 = sphi 0, %s99
      %s117 = sphi 0, %s117
      %s119 = sphi 0, %s117
      %s120 = sphi 0, %s119
      %s134 = sphi 0, %s120
      %s138 = sphi 0, %s138
      %s140 = sphi 0, %s138
      %s141 = sphi 0, %s140
      %s155 = sphi 0, %s141
      %s161 = sphi 0, %s163
      %s164 = sphi 0, %s161
      %s165 = sphi 0, %s164
      %s181 = sphi 0, %s165
    $region4: #{_blend_linear_resident_impl.1} parent=1 // loop_header_branch
      %23 = sbr.rel (%p21) target = $region8
    $region5: #{_blend_linear_resident_impl.1} parent=1 // loop_body
      %s25 = ssub.s32 %s20, 1
      %s26 = ssub.s32 %s20, 2
      %s27 = sadd.s32 %s20, 1
      %s29 = sadd.s32 %s28, 1
      %p32 = scmp.eq.s32.totalorder %s20, 1
      %p33 = scmp.ne.s32.totalorder %s28, %s30
      %p34 = scmp.eq.s32.totalorder %s20, 0
      %p35 = por %p33, %p34
      %p36 = scmp.ne.s32.totalorder %s28, %s30
      %p37 = scmp.eq.s32.totalorder %s25, 1
      %p38 = por %p36, %p37
      %p39 = scmp.ne.s32.totalorder %s30, %s31
      %p40 = scmp.eq.s32.totalorder %s25, 0
      %p41 = por %p39, %p40
      %p42 = scmp.ne.s32.totalorder %s30, %s31
      %p43 = scmp.eq.s32.totalorder %s26, 1
      %p44 = por %p42, %p43
      %p46 = scmp.ne.s32.totalorder %s31, %s45
      %p47 = scmp.eq.s32.totalorder %s26, 0
      %p48 = por %p46, %p47
      %s49 = ssub.s32 %s20, %s27
      %p50 = scmp.eq.s32.totalorder %s49, 0
      %s52 = sadd.s32 %s51, 1
      %s53 = scalar_select %p50, %s51, %s52
      %p56 = pneg %p50
      %p57 = scmp.eq.s32.totalorder %s20, 1
      %p58 = por %p56, %p57
      %p59 = scmp.ne.s32.totalorder %s51, %s54
      %p60 = scmp.eq.s32.totalorder %s20, 0
      %p61 = por %p59, %p60
      %p62 = scmp.ne.s32.totalorder %s51, %s54
      %p63 = scmp.eq.s32.totalorder %s25, 1
      %p64 = por %p62, %p63
      %p65 = scmp.ne.s32.totalorder %s54, %s55
      %p66 = scmp.eq.s32.totalorder %s25, 0
      %p67 = por %p65, %p66
      %p68 = scmp.ne.s32.totalorder %s54, %s55
      %p69 = scmp.eq.s32.totalorder %s26, 1
      %p70 = por %p68, %p69
      %p72 = scmp.ne.s32.totalorder %s55, %s71
      %p73 = scmp.eq.s32.totalorder %s26, 0
      %p74 = por %p72, %p73
      %s76 = sadd.s32 %s75, 1
      %p79 = scmp.eq.s32.totalorder %s20, 1
      %p80 = scmp.ne.s32.totalorder %s75, %s77
      %p81 = scmp.eq.s32.totalorder %s20, 0
      %p82 = por %p80, %p81
      %p83 = scmp.ne.s32.totalorder %s75, %s77
      %p84 = scmp.eq.s32.totalorder %s25, 1
      %p85 = por %p83, %p84
      %p86 = scmp.ne.s32.totalorder %s77, %s78
      %p87 = scmp.eq.s32.totalorder %s25, 0
      %p88 = por %p86, %p87
      %p89 = scmp.ne.s32.totalorder %s77, %s78
      %p90 = scmp.eq.s32.totalorder %s26, 1
      %p91 = por %p89, %p90
      %p93 = scmp.ne.s32.totalorder %s78, %s92
      %p94 = scmp.eq.s32.totalorder %s26, 0
      %p95 = por %p93, %p94
      %s97 = sadd.s32 %s96, 1
      %p100 = scmp.eq.s32.totalorder %s20, 1
      %p101 = scmp.ne.s32.totalorder %s96, %s98
      %p102 = scmp.eq.s32.totalorder %s20, 0
      %p103 = por %p101, %p102
      %p104 = scmp.ne.s32.totalorder %s96, %s98
      %p105 = scmp.eq.s32.totalorder %s25, 1
      %p106 = por %p104, %p105
      %p107 = scmp.ne.s32.totalorder %s98, %s99
      %p108 = scmp.eq.s32.totalorder %s25, 0
      %p109 = por %p107, %p108
      %p110 = scmp.ne.s32.totalorder %s98, %s99
      %p111 = scmp.eq.s32.totalorder %s26, 1
      %p112 = por %p110, %p111
      %p114 = scmp.ne.s32.totalorder %s99, %s113
      %p115 = scmp.eq.s32.totalorder %s26, 0
      %p116 = por %p114, %p115
      %s118 = sadd.s32 %s117, 1
      %p121 = scmp.eq.s32.totalorder %s20, 1
      %p122 = scmp.ne.s32.totalorder %s117, %s119
      %p123 = scmp.eq.s32.totalorder %s20, 0
      %p124 = por %p122, %p123
      %p125 = scmp.ne.s32.totalorder %s117, %s119
      %p126 = scmp.eq.s32.totalorder %s25, 1
      %p127 = por %p125, %p126
      %p128 = scmp.ne.s32.totalorder %s119, %s120
      %p129 = scmp.eq.s32.totalorder %s25, 0
      %p130 = por %p128, %p129
      %p131 = scmp.ne.s32.totalorder %s119, %s120
      %p132 = scmp.eq.s32.totalorder %s26, 1
      %p133 = por %p131, %p132
      %p135 = scmp.ne.s32.totalorder %s120, %s134
      %p136 = scmp.eq.s32.totalorder %s26, 0
      %p137 = por %p135, %p136
      %s139 = sadd.s32 %s138, 1
      %p142 = scmp.eq.s32.totalorder %s20, 1
      %p143 = scmp.ne.s32.totalorder %s138, %s140
      %p144 = scmp.eq.s32.totalorder %s20, 0
      %p145 = por %p143, %p144
      %p146 = scmp.ne.s32.totalorder %s138, %s140
      %p147 = scmp.eq.s32.totalorder %s25, 1
      %p148 = por %p146, %p147
      %p149 = scmp.ne.s32.totalorder %s140, %s141
      %p150 = scmp.eq.s32.totalorder %s25, 0
      %p151 = por %p149, %p150
      %p152 = scmp.ne.s32.totalorder %s140, %s141
      %p153 = scmp.eq.s32.totalorder %s26, 1
      %p154 = por %p152, %p153
      %p156 = scmp.ne.s32.totalorder %s141, %s155
      %p157 = scmp.eq.s32.totalorder %s26, 0
      %p158 = por %p156, %p157
      %s159 = ssub.s32 %s20, %s27
      %p160 = scmp.eq.s32.totalorder %s159, 0
      %s162 = sadd.s32 %s161, 1
      %s163 = scalar_select %p160, %s161, %s162
      %p166 = pneg %p160
      %p167 = scmp.eq.s32.totalorder %s20, 1
      %p168 = por %p166, %p167
      %p169 = scmp.ne.s32.totalorder %s161, %s164
      %p170 = scmp.eq.s32.totalorder %s20, 0
      %p171 = por %p169, %p170
      %p172 = scmp.ne.s32.totalorder %s161, %s164
      %p173 = scmp.eq.s32.totalorder %s25, 1
      %p174 = por %p172, %p173
      %p175 = scmp.ne.s32.totalorder %s164, %s165
      %p176 = scmp.eq.s32.totalorder %s25, 0
      %p177 = por %p175, %p176
      %p178 = scmp.ne.s32.totalorder %s164, %s165
      %p179 = scmp.eq.s32.totalorder %s26, 1
      %p180 = por %p178, %p179
      %p182 = scmp.ne.s32.totalorder %s165, %s181
      %p183 = scmp.eq.s32.totalorder %s26, 0
      %p184 = por %p182, %p183
      %p185 = scmp.le.s32.totalorder 1, %s20
      %p186 = scmp.lt.s32.totalorder %s20, 3
      %p187 = pnand %p185, %p186
      %p188 = pneg %p187
      // Predicated region
      $region9: #{_blend_linear_resident_impl.1} parent=5 // pred_check
        _
      $region10: #{_blend_linear_resident_impl.1} parent=5 // pred_check_branch
        %190 = sbr.rel (%p187) target = $region12
      $region11: #{_blend_linear_resident_impl.1} parent=5 // pred_region
        %s191 = ssub.s32 %s20, 1
        // Predicated region
        $region13: #{_blend_linear_resident_impl.1} parent=11 // pred_check
          %p192 = pneg %p41
        $region14: #{_blend_linear_resident_impl.1} parent=11 // pred_check_branch
          %194 = sbr.rel (%p192) target = $region16
        $region15: #{_blend_linear_resident_impl.1} parent=11 // pred_region
          _
        $region16: #{_blend_linear_resident_impl.1} parent=11 // pred_fallthru
          _
        // Predicated region
        $region17: #{_blend_linear_resident_impl.1} parent=11 // pred_check
          %p195 = pneg %p88
        $region18: #{_blend_linear_resident_impl.1} parent=11 // pred_check_branch
          %197 = sbr.rel (%p195) target = $region20
        $region19: #{_blend_linear_resident_impl.1} parent=11 // pred_region
          %199 = vsyncadd [#allocation7], 0
          %s200 = sshll.u32 %s2, 4
          %s201 = int_to_ptr.hbm [resolvable:$true] %s200
          %s202 = sshll.u32 [#allocation6], 4
          %s203 = int_to_ptr.vmem [resolvable:$true] %s202
          %208 = dma.hbm_to_vmem [thread:$0]  %s201, 512, %s203, [#allocation7], 128, 128, 8
        $region20: #{_blend_linear_resident_impl.1} parent=11 // pred_fallthru
          _
        // Predicated region
        $region21: #{_blend_linear_resident_impl.1} parent=11 // pred_check
          %p209 = pneg %p109
        $region22: #{_blend_linear_resident_impl.1} parent=11 // pred_check_branch
          %211 = sbr.rel (%p209) target = $region24
        $region23: #{_blend_linear_resident_impl.1} parent=11 // pred_region
          %213 = vsyncadd [#allocation7], 0
          %s214 = sshll.u32 %s3, 4
          %s215 = int_to_ptr.hbm [resolvable:$true] %s214
          %s216 = sshll.u32 [#allocation8], 4
          %s217 = int_to_ptr.vmem [resolvable:$true] %s216
          %222 = dma.hbm_to_vmem [thread:$0]  %s215, 512, %s217, [#allocation7], 128, 128, 8
        $region24: #{_blend_linear_resident_impl.1} parent=11 // pred_fallthru
          _
        // Predicated region
        $region25: #{_blend_linear_resident_impl.1} parent=11 // pred_check
          %p223 = pneg %p130
        $region26: #{_blend_linear_resident_impl.1} parent=11 // pred_check_branch
          %225 = sbr.rel (%p223) target = $region28
        $region27: #{_blend_linear_resident_impl.1} parent=11 // pred_region
          _
        $region28: #{_blend_linear_resident_impl.1} parent=11 // pred_fallthru
          _
        // Predicated region
        $region29: #{_blend_linear_resident_impl.1} parent=11 // pred_check
          %p226 = pneg %p151
        $region30: #{_blend_linear_resident_impl.1} parent=11 // pred_check_branch
          %228 = sbr.rel (%p226) target = $region32
        $region31: #{_blend_linear_resident_impl.1} parent=11 // pred_region
          _
        $region32: #{_blend_linear_resident_impl.1} parent=11 // pred_fallthru
          _
      $region12: #{_blend_linear_resident_impl.1} parent=5 // pred_fallthru
        _
      %p229 = scmp.lt.s32.totalorder %s20, 2
      // Predicated region
      $region33: #{_blend_linear_resident_impl.1} parent=5 // pred_check
        %p230 = pneg %p229
      $region34: #{_blend_linear_resident_impl.1} parent=5 // pred_check_branch
        %232 = sbr.rel (%p230) target = $region36
      $region35: #{_blend_linear_resident_impl.1} parent=5 // pred_region
        // Predicated region
        $region37: #{_blend_linear_resident_impl.1} parent=35 // pred_check
          %p233 = pneg %p61
        $region38: #{_blend_linear_resident_impl.1} parent=35 // pred_check_branch
          %235 = sbr.rel (%p233) target = $region40
        $region39: #{_blend_linear_resident_impl.1} parent=35 // pred_region
          %s236 = sand.u32 %s51, 1
          %s237 = scalar_lea.sflag [#allocation4], %s236
          %s238 = sand.u32 %s51, 1
          %s239 = smul.addr %s238, 8
          %s240 = scalar_lea.vmem [#allocation3], %s239
          %242 = vsyncadd %s237, 0
          %s243 = smul.addr %s20, 8
          %s244 = scalar_lea.hbm %s1, %s243
          %s246 = sshll.u32 %s244, 4
          %s247 = int_to_ptr.hbm [resolvable:$true] %s246
          %s248 = sshll.u32 %s240, 4
          %s249 = int_to_ptr.vmem [resolvable:$true] %s248
          %251 = dma.hbm_to_vmem [thread:$0]  %s247, 128, %s249, %s237
        $region40: #{_blend_linear_resident_impl.1} parent=35 // pred_fallthru
          _
      $region36: #{_blend_linear_resident_impl.1} parent=5 // pred_fallthru
        _
      %p252 = scmp.le.s32.totalorder 1, %s20
      %p253 = scmp.lt.s32.totalorder %s20, 3
      %p254 = pnand %p252, %p253
      %p255 = pneg %p254
      // Predicated region
      $region41: #{_blend_linear_resident_impl.1} parent=5 // pred_check
        _
      $region42: #{_blend_linear_resident_impl.1} parent=5 // pred_check_branch
        %257 = sbr.rel (%p254) target = $region44
      $region43: #{_blend_linear_resident_impl.1} parent=5 // pred_region
        %s258 = ssub.s32 %s20, 1
        %s259 = sand.u32 %s54, 1
        %s260 = scalar_lea.sflag [#allocation4], %s259
        %s261 = sand.u32 %s54, 1
        %s262 = smul.addr %s261, 8
        %s263 = scalar_lea.vmem [#allocation3], %s262
        // Predicated region
        $region45: #{_blend_linear_resident_impl.1} parent=43 // pred_check
          %p264 = pneg %p67
        $region46: #{_blend_linear_resident_impl.1} parent=43 // pred_check_branch
          %266 = sbr.rel (%p264) target = $region48
        $region47: #{_blend_linear_resident_impl.1} parent=43 // pred_region
          %268 = dma.done %s260, 128
        $region48: #{_blend_linear_resident_impl.1} parent=43 // pred_fallthru
          _
        // Predicated region
        $region49: #{_blend_linear_resident_impl.1} parent=43 // pred_check
          %p269 = pneg %p88
        $region50: #{_blend_linear_resident_impl.1} parent=43 // pred_check_branch
          %271 = sbr.rel (%p269) target = $region52
        $region51: #{_blend_linear_resident_impl.1} parent=43 // pred_region
          %273 = dma.done [#allocation7], 512
        $region52: #{_blend_linear_resident_impl.1} parent=43 // pred_fallthru
          _
        // Predicated region
        $region53: #{_blend_linear_resident_impl.1} parent=43 // pred_check
          %p274 = pneg %p109
        $region54: #{_blend_linear_resident_impl.1} parent=43 // pred_check_branch
          %276 = sbr.rel (%p274) target = $region56
        $region55: #{_blend_linear_resident_impl.1} parent=43 // pred_region
          %278 = dma.done [#allocation7], 512
        $region56: #{_blend_linear_resident_impl.1} parent=43 // pred_fallthru
          _
        %p279 = pneg %p41
        %p280 = pneg %p38
        %s281 = sand.u32 %s54, 1
        %s282 = scalar_lea.sflag [#allocation4], %s281
        %s283 = sand.u32 %s54, 1
        %s284 = smul.addr %s283, 8
        %s285 = scalar_lea.vmem [#allocation3], %s284
        %p286 = pneg %p67
        %p287 = pneg %p64
        %p288 = pneg %p88
        %p289 = pneg %p85
        %p290 = pneg %p109
        %p291 = pneg %p106
        %p292 = pneg %p130
        %p293 = pneg %p127
        %p294 = pneg %p151
        %p295 = pneg %p148
        %p296 = pneg %p177
        %p297 = pneg %p174
        %s298 = sand.u32 %s164, 1
        %s299 = scalar_lea.sflag [#allocation5], %s298
        %s300 = sand.u32 %s164, 1
        %s301 = smul.addr %s300, 8
        %s302 = scalar_lea.vmem [#allocation9], %s301
        %s303 = sld [smem:[#allocation2]]
        %v304 = vld [vmem:[#allocation6] sm:$0xff]
        %v305 = vld [vmem:[#allocation6 + $0x8] sm:$0xff]
        %v306 = vld [vmem:[#allocation6 + $0x10] sm:$0xff]
        %v307 = vld [vmem:[#allocation6 + $0x18] sm:$0xff]
        %v308 = vld [vmem:[#allocation8] sm:$0xff]
        %v309 = vld [vmem:[#allocation8 + $0x8] sm:$0xff]
        %v310 = vld [vmem:[#allocation8 + $0x10] sm:$0xff]
        %v311 = vld [vmem:[#allocation8 + $0x18] sm:$0xff]
        %v312 = vsub.f32 %v308, %v304
        %v313 = vsub.f32 %v309, %v305
        %v314 = vsub.f32 %v310, %v306
        %v315 = vsub.f32 %v311, %v307
        %v316 = vstv %s303
        %v317 = vmul.f32 %v312, %v316
        %v318 = vmul.f32 %v313, %v316
        %v319 = vmul.f32 %v314, %v316
        %v320 = vmul.f32 %v315, %v316
        %v321 = vadd.f32 %v304, %v317
        %v322 = vadd.f32 %v305, %v318
        %v323 = vadd.f32 %v306, %v319
        %v324 = vadd.f32 %v307, %v320
        %v325 = vld [vmem:[%s4] sm:$0x1]
        %v326 = vld [vmem:[%s5] sm:$0x1]
        %v327 = vsub.f32 %v326, %v325
        %v328 = vmul.f32 %v327, %v316
        %v329 = vadd.f32 %v325, %v328
        %v330 = vld [vmem:[%s263] sm:$0xff]
        %v332 = vperm.slane %v329, 0
        %vm334 = vcmask 261120
        %v336 = vsel %vm334, %v330, 0
        %338 = vmatpush.msra.mxu0 0.0
        %339 = vmatpush.msra.mxu0 0.0
        %340 = vmatpush.msra.mxu0 0.0
        %341 = vmatpush.msra.mxu0 0.0
        %342 = vmatpush.msra.mxu0 0.0
        %343 = vmatpush.msra.mxu0 0.0
        %344 = vmatpush.msra.mxu0 0.0
        %345 = vmatpush.msra.mxu0 0.0
        %346 = vmatpush.msra.mxu0 0.0
        %347 = vmatpush.msra.mxu0 0.0
        %348 = vmatpush.msra.mxu0 0.0
        %349 = vmatpush.msra.mxu0 0.0
        %350 = vmatpush.msra.mxu0 %v324
        %351 = vmatpush.msra.mxu0 %v323
        %352 = vmatpush.msra.mxu0 %v322
        %353 = vmatpush.msra.mxu0 %v321
        %354 = vmatmul.f32.gmra.mxu0 %v336
        %v355 = vpop.f32.mrf.mxu0
        %v356 = vadd.f32 %v332, %v355
        %357 = vdwg.mxu0
        %358 = vst [vmem:[%s302] sm:$0xff] %v356
        %s359 = sand.u32 %s164, 1
        %s360 = scalar_lea.sflag [#allocation5], %s359
        %s361 = sand.u32 %s164, 1
        %s362 = smul.addr %s361, 8
        %s363 = scalar_lea.vmem [#allocation9], %s362
        // Predicated region
        $region57: #{_blend_linear_resident_impl.1} parent=43 // pred_check
          %p364 = pneg %p174
        $region58: #{_blend_linear_resident_impl.1} parent=43 // pred_check_branch
          %366 = sbr.rel (%p364) target = $region60
        $region59: #{_blend_linear_resident_impl.1} parent=43 // pred_region
          %368 = vsyncadd %s360, 0
          %s369 = smul.addr %s25, 8
          %s370 = scalar_lea.hbm %s6, %s369
          %s372 = sshll.u32 %s363, 4
          %s373 = int_to_ptr.vmem [resolvable:$true] %s372
          %s374 = sshll.u32 %s370, 4
          %s375 = int_to_ptr.hbm [resolvable:$true] %s374
          %377 = dma.vmem_to_hbm [thread:$0]  %s373, 128, %s375, %s360
        $region60: #{_blend_linear_resident_impl.1} parent=43 // pred_fallthru
          _
      $region44: #{_blend_linear_resident_impl.1} parent=5 // pred_fallthru
        _
      %p378 = scmp.le.s32.totalorder 2, %s20
      // Predicated region
      $region61: #{_blend_linear_resident_impl.1} parent=5 // pred_check
        %p379 = pneg %p378
      $region62: #{_blend_linear_resident_impl.1} parent=5 // pred_check_branch
        %381 = sbr.rel (%p379) target = $region64
      $region63: #{_blend_linear_resident_impl.1} parent=5 // pred_region
        %s382 = ssub.s32 %s20, 2
        // Predicated region
        $region65: #{_blend_linear_resident_impl.1} parent=63 // pred_check
          %p383 = pneg %p180
        $region66: #{_blend_linear_resident_impl.1} parent=63 // pred_check_branch
          %385 = sbr.rel (%p383) target = $region68
        $region67: #{_blend_linear_resident_impl.1} parent=63 // pred_region
          %s386 = sand.u32 %s165, 1
          %s387 = scalar_lea.sflag [#allocation5], %s386
          %s388 = sand.u32 %s165, 1
          %s389 = smul.addr %s388, 8
          %s390 = scalar_lea.vmem [#allocation9], %s389
          %392 = dma.done %s387, 128
        $region68: #{_blend_linear_resident_impl.1} parent=63 // pred_fallthru
          _
      $region64: #{_blend_linear_resident_impl.1} parent=5 // pred_fallthru
        _
    $region6: #{_blend_linear_resident_impl.1} parent=1 // loop_footer
      %s24 = sadd.s32 1, %s20
    $region7: #{_blend_linear_resident_impl.1} parent=1 // loop_footer_branch
      %19 = sbr.rel target = $region3
    $region8: #{_blend_linear_resident_impl.1} parent=1 // loop_exit
      _
    %393 = vsyncpa [#allocation4], 1
    %s394 = scalar_lea.sflag [#allocation4], 1
    %395 = vsyncpa %s394, 1
    %396 = vsyncpa [#allocation7], 1
    %397 = vsyncpa [#allocation5], 1
    %s398 = scalar_lea.sflag [#allocation5], 1
    %399 = vsyncpa %s398, 1

</llo_original>
